<compile_context>
chip_gen: v7x
topology: tpu7x:2x2x1
jax: 0.10.0
libtpu: 0.0.40
codegen_flags: <defaults>
</compile_context>

<pallas_src>
import functools

import jax
import jax.numpy as jnp
from jax.experimental import pallas as pl
from jax.experimental.pallas import tpu as pltpu


def _nll_partial_sum_kernel(pred_ref, tgt_ref, out_ref, *,
                            total_n, tile_n, steps_total, k_steps):
    """Accumulates sum_i pred[i, target[i]] for this part's row range.

    pred_ref: (tile_n, C) log-probabilities (native dtype)
    tgt_ref:  (tile_n, 1) int32 class indices
    out_ref:  (8, 128) f32 partial-sum block (resident across the k axis)
    """
    p = pl.program_id(0)
    k = pl.program_id(1)

    @pl.when(k == 0)
    def _():
        out_ref[...] = jnp.zeros_like(out_ref)

    pred = pred_ref[...].astype(jnp.float32)          # in-kernel upcast (free VPU)
    tgt = tgt_ref[...]                                # (tile_n, 1) int32
    tn, c = pred.shape

    tile_idx = p * k_steps + k                        # unclamped global tile index
    row0 = tile_idx * tile_n

    col = jax.lax.broadcasted_iota(jnp.int32, (tn, c), dimension=1)
    row = jax.lax.broadcasted_iota(jnp.int32, (tn, c), dimension=0) + row0

    valid_tile = tile_idx < steps_total               # masks clamped duplicate tiles
    # TODO(synk): F.nll_loss's ignore_index=-100 and per-class weights are not
    # modeled; valid labels are assumed (as in the reference module's usage).
    mask = (col == tgt) & (row < total_n) & valid_tile

    tile_sum = jnp.sum(jnp.where(mask, pred, 0.0), keepdims=True)   # (1, 1)
    out_ref[...] += tile_sum                          # broadcast-add into block


def nll_loss_pallas(pred, target, trans_feat=None, *,
                    tile_rows=1024, num_parallel=2):
    """Equivalent of get_loss.forward(pred, target, trans_feat)."""
    del trans_feat                                    # unused by the reference module
    n, c = pred.shape

    # Row-tile size: multiple of 8 sublanes, bounded so a double-buffered
    # (tile_n, C) tile stays at ~2 MiB of VMEM regardless of C.
    bytes_per_row = max(1, c * pred.dtype.itemsize)
    tile_n = min(int(tile_rows), max(8, (2 * 1024 * 1024) // bytes_per_row))
    tile_n = max(8, (tile_n // 8) * 8)
    if n <= tile_n:
        tile_n = n                                    # single full-extent tile

    steps_total = pl.cdiv(n, tile_n)
    n_parts = num_parallel if steps_total >= 2 * num_parallel else 1
    k_steps = pl.cdiv(steps_total, n_parts)

    tgt2d = target.reshape(n, 1).astype(jnp.int32)

    def _tile_index(p, k):
        # Clamp so any extra trailing tiles of the (P, K) grid read a valid
        # block; their contribution is masked out inside the kernel.
        t = jnp.minimum(p * k_steps + k, steps_total - 1)
        return (t, 0)

    kernel = functools.partial(
        _nll_partial_sum_kernel,
        total_n=n, tile_n=tile_n, steps_total=steps_total, k_steps=k_steps)

    partials = pl.pallas_call(
        kernel,
        out_shape=jax.ShapeDtypeStruct((n_parts * 8, 128), jnp.float32),
        grid_spec=pltpu.PrefetchScalarGridSpec(
            num_scalar_prefetch=0,
            grid=(n_parts, k_steps),
            in_specs=[
                pl.BlockSpec((tile_n, c), _tile_index),   # pred tiles, native dtype
                pl.BlockSpec((tile_n, 1), _tile_index),   # target tiles
            ],
            out_specs=pl.BlockSpec((8, 128), lambda p, k: (p, 0)),
        ),
        compiler_params=pltpu.CompilerParams(
            dimension_semantics=("parallel", "arbitrary"),
            vmem_limit_bytes=32 * 1024 * 1024,
        ),
    )(pred, tgt2d)

    # Tiny epilogue: combine per-part partial sums, mean-reduce, negate.
    partial_sums = partials[0::8, 0]                  # (n_parts,)
    return -jnp.sum(partial_sums) / jnp.float32(n)


if __name__ == "__main__":
    key = jax.random.PRNGKey(0)
    k1, k2, k3, k4 = jax.random.split(key, 4)

    # --- Case 1: small shapes consistent with the module's head (N, C) ---
    N, C = 8, 16
    logits = jax.random.normal(k1, (N, C), dtype=jnp.float32)
    pred = jax.nn.log_softmax(logits, axis=-1)                  # log-probabilities
    target = jax.random.randint(k2, (N,), 0, C, dtype=jnp.int32)
    trans_feat = jnp.zeros((N, 4, 4), dtype=jnp.float32)        # unused, as in torch

    loss = nll_loss_pallas(pred, target, trans_feat)
    jax.block_until_ready(loss)
    ref = -jnp.mean(pred[jnp.arange(N), target])
    assert jnp.allclose(loss, ref, atol=1e-5, rtol=1e-5), (loss, ref)

    # --- Case 2: gridded / pipelined path (multi-tile, partial last tile,
    #     parallel split, clamped duplicate tile, native bf16 input) ---
    N2, C2 = 1000, 16
    logits2 = jax.random.normal(k3, (N2, C2), dtype=jnp.float32)
    pred2 = jax.nn.log_softmax(logits2, axis=-1).astype(jnp.bfloat16)
    target2 = jax.random.randint(k4, (N2,), 0, C2, dtype=jnp.int32)

    loss2 = nll_loss_pallas(pred2, target2, None, tile_rows=96, num_parallel=2)
    jax.block_until_ready(loss2)
    ref2 = -jnp.mean(pred2.astype(jnp.float32)[jnp.arange(N2), target2])
    assert jnp.allclose(loss2, ref2, atol=1e-5, rtol=1e-5), (loss2, ref2)

    print("KERNEL_OK")
</pallas_src>

<mosaic_0001>
module attributes {stable_mosaic.version = 11 : i64} {
  func.func @_nll_partial_sum_kernel(%arg0: i32, %arg1: i32, %arg2: memref<8x16xf32, #tpu.memory_space<vmem>>, %arg3: memref<8x1xi32, #tpu.memory_space<vmem>>, %arg4: memref<8x128xf32, #tpu.memory_space<vmem>>) attributes {dimension_semantics = [#tpu.dimension_semantics<parallel>, #tpu.dimension_semantics<arbitrary>], iteration_bounds = array<i64: 1, 1>, scalar_prefetch = 0 : i64, scratch_operands = 0 : i64, tpu.core_type = #tpu.core_type<tc>, window_params = [{transform_indices = @transform_0, window_bounds = array<i64: 8, 16>}, {transform_indices = @transform_1, window_bounds = array<i64: 8, 1>}, {transform_indices = @transform_2, window_bounds = array<i64: 8, 128>}]} {
    %c0_i32 = arith.constant 0 : i32
    %0 = arith.cmpi eq, %arg1, %c0_i32 : i32
    %1 = arith.extui %0 : i1 to i32
    %c0_i32_0 = arith.constant 0 : i32
    %2 = arith.cmpi ne, %1, %c0_i32_0 : i32
    scf.if %2 {
      %cst_11 = arith.constant 0.000000e+00 : f32
      %31 = vector.broadcast %cst_11 : f32 to vector<8x128xf32>
      %c0_12 = arith.constant 0 : index
      %c0_13 = arith.constant 0 : index
      %32 = vector.load %arg4[%c0_12, %c0_13] : memref<8x128xf32, #tpu.memory_space<vmem>>, vector<8x128xf32>
      tpu.vector_store %arg4[%c0_12, %c0_13], %31 {strides = array<i32>} : memref<8x128xf32, #tpu.memory_space<vmem>>, vector<8x128xf32>,
    } else {
    }
    %c0 = arith.constant 0 : index
    %c0_1 = arith.constant 0 : index
    %3 = vector.load %arg2[%c0, %c0_1] : memref<8x16xf32, #tpu.memory_space<vmem>>, vector<8x16xf32>
    %c0_2 = arith.constant 0 : index
    %c0_3 = arith.constant 0 : index
    %4 = vector.load %arg3[%c0_2, %c0_3] : memref<8x1xi32, #tpu.memory_space<vmem>>, vector<8x1xi32>
    %c1_i32 = arith.constant 1 : i32
    %5 = arith.muli %arg0, %c1_i32 : i32
    %6 = arith.addi %5, %arg1 : i32
    %c8_i32 = arith.constant 8 : i32
    %7 = arith.muli %6, %c8_i32 : i32
    %8 = tpu.iota {dimensions = array<i32: 1>} : vector<8x16xi32>
    %9 = tpu.iota {dimensions = array<i32: 0>} : vector<8x16xi32>
    %10 = vector.broadcast %7 : i32 to vector<8x16xi32>
    %11 = arith.addi %9, %10 : vector<8x16xi32>
    %c1_i32_4 = arith.constant 1 : i32
    %12 = arith.cmpi slt, %6, %c1_i32_4 : i32
    %13 = vector.broadcast %4 : vector<8x1xi32> to vector<8x16xi32>
    %14 = arith.cmpi eq, %8, %13 : vector<8x16xi32>
    %c8_i32_5 = arith.constant 8 : i32
    %15 = vector.broadcast %c8_i32_5 : i32 to vector<8x16xi32>
    %16 = arith.cmpi slt, %11, %15 : vector<8x16xi32>
    %17 = arith.andi %14, %16 : vector<8x16xi1>
    %18 = vector.broadcast %12 : i1 to vector<8x16xi1>
    %19 = arith.andi %17, %18 : vector<8x16xi1>
    %cst = arith.constant 0.000000e+00 : f32
    %20 = vector.broadcast %cst : f32 to vector<8x16xf32>
    %21 = arith.select %19, %3, %20 : vector<8x16xi1>, vector<8x16xf32>
    %22 = vector.shape_cast %21 : vector<8x16xf32> to vector<1x8x16xf32>
    %cst_6 = arith.constant dense<0.000000e+00> : vector<1xf32>
    %23 = vector.multi_reduction <add>, %22, %cst_6 [1, 2] : vector<1x8x16xf32> to vector<1xf32>
    %24 = vector.shape_cast %23 : vector<1xf32> to vector<1x1x1xf32>
    %25 = vector.extract %24[0, 0, 0] : f32 from vector<1x1x1xf32>
    %26 = vector.broadcast %25 : f32 to vector<1x1xf32>
    %c0_7 = arith.constant 0 : index
    %c0_8 = arith.constant 0 : index
    %27 = vector.load %arg4[%c0_7, %c0_8] : memref<8x128xf32, #tpu.memory_space<vmem>>, vector<8x128xf32>
    %28 = vector.broadcast %26 : vector<1x1xf32> to vector<8x128xf32>
    %29 = arith.addf %27, %28 : vector<8x128xf32>
    %c0_9 = arith.constant 0 : index
    %c0_10 = arith.constant 0 : index
    %30 = vector.load %arg4[%c0_9, %c0_10] : memref<8x128xf32, #tpu.memory_space<vmem>>, vector<8x128xf32>
    tpu.vector_store %arg4[%c0_9, %c0_10], %29 {strides = array<i32>} : memref<8x128xf32, #tpu.memory_space<vmem>>, vector<8x128xf32>,
    return
  }
  func.func @transform_0(%arg0: i32, %arg1: i32) -> (i32, i32) {
    %c1_i32 = arith.constant 1 : i32
    %0 = arith.muli %arg0, %c1_i32 : i32
    %1 = arith.addi %0, %arg1 : i32
    %c0_i32 = arith.constant 0 : i32
    %2 = arith.minsi %1, %c0_i32 : i32
    %c0_i32_0 = arith.constant 0 : i32
    %c0_i32_1 = arith.constant 0 : i32
    return %2, %c0_i32_0 : i32, i32
  }
  func.func @transform_1(%arg0: i32, %arg1: i32) -> (i32, i32) {
    %c1_i32 = arith.constant 1 : i32
    %0 = arith.muli %arg0, %c1_i32 : i32
    %1 = arith.addi %0, %arg1 : i32
    %c0_i32 = arith.constant 0 : i32
    %2 = arith.minsi %1, %c0_i32 : i32
    %c0_i32_0 = arith.constant 0 : i32
    %c0_i32_1 = arith.constant 0 : i32
    return %2, %c0_i32_0 : i32, i32
  }
  func.func @transform_2(%arg0: i32, %arg1: i32) -> (i32, i32) {
    %c0_i32 = arith.constant 0 : i32
    %c0_i32_0 = arith.constant 0 : i32
    return %arg0, %c0_i32 : i32, i32
  }
}

</mosaic_0001>

<llo_original>
// kernel: tpu_custom_call.1
$region0: #{tpu_custom_call.1}
  #allocation0 [shape = 'u32[]', space=smem, size = 0x4, offset = 0x4, fixed_abs, tag = 'smem constant byte address 0x4 - core index']
  #allocation1 [shape = 'u32[144,128]{1,0:T(1,128)}', space=vmem, size = 0x12000, scoped, tag = 'internal scratch']
  %s0 = inlined_call_operand.vmem [shape: f32[8,16], index: 0, kind: input, shape index: {}]
  %s1 = inlined_call_operand.vmem [shape: s32[8,1], index: 1, kind: input, shape index: {}]
  %s2 = inlined_call_operand.hbm [shape: f32[8,128], index: 2, kind: output, shape index: {}]
  %s3 = sld [smem:[#allocation0]]
  $region22: #{tpu_custom_call.1} parent=0
    _
  %s5 = ssub.s32 1, %s3
  %s6 = scalar_select 0, %s5, %s3
  $region1: #{tpu_custom_call.1} parent=0
    #allocation2 [shape = 'u8[4096]{0}', space=vmem, size = 0x1000, scoped, tag = 'output window, operand 0, single buffered']
    #allocation3 [shape = 's32[1]{0}', space=sflag, size = 0x4, scoped, tag = 'scoped memory for tpu_custom_call.1']
    %7 = vsyncpa [#allocation3], 0
    // Predicated region
    $region2: #{tpu_custom_call.1} parent=1 // pred_check
      _
    $region3: #{tpu_custom_call.1} parent=1 // pred_check_branch
      %9 = sbr.rel (0) target = $region5
    $region4: #{tpu_custom_call.1} parent=1 // pred_region
      %s10 = sadd.s32 0, 0
      %p11 = scmp.lt.s32.totalorder %s10, 0
      %s12 = scalar_select %p11, %s10, 0
      %p13 = scmp.lt.s32.totalorder %s12, 0
      %s14 = scalar_select %p13, %s12, 0
      %s15 = smul.addr %s14, 8
      %s16 = scalar_lea.vmem %s0, %s15
      %s17 = sadd.s32 0, 0
      %p18 = scmp.lt.s32.totalorder %s17, 0
      %s19 = scalar_select %p18, %s17, 0
    $region5: #{tpu_custom_call.1} parent=1 // pred_fallthru
      _
    // Predicated region
    $region6: #{tpu_custom_call.1} parent=1 // pred_check
      _
    $region7: #{tpu_custom_call.1} parent=1 // pred_check_branch
      %21 = sbr.rel (0) target = $region9
    $region8: #{tpu_custom_call.1} parent=1 // pred_region
      %s22 = sadd.s32 0, 0
      %p23 = scmp.lt.s32.totalorder %s22, 0
      %s24 = scalar_select %p23, %s22, 0
      %p25 = scmp.lt.s32.totalorder %s24, 0
      %s26 = scalar_select %p25, %s24, 0
      %s27 = smul.addr %s26, 8
      %s28 = scalar_lea.vmem %s1, %s27
      %s29 = sadd.s32 0, 0
      %p30 = scmp.lt.s32.totalorder %s29, 0
      %s31 = scalar_select %p30, %s29, 0
    $region9: #{tpu_custom_call.1} parent=1 // pred_fallthru
      _
    %s32 = sadd.s32 0, 0
    %p33 = scmp.lt.s32.totalorder %s32, 0
    %s34 = scalar_select %p33, %s32, 0
    %p35 = scmp.lt.s32.totalorder %s34, 0
    %s36 = scalar_select %p35, %s34, 0
    %s37 = smul.addr %s36, 8
    %s38 = scalar_lea.vmem %s0, %s37
    %s39 = sadd.s32 0, 0
    %p40 = scmp.lt.s32.totalorder %s39, 0
    %s41 = scalar_select %p40, %s39, 0
    %p42 = scmp.lt.s32.totalorder %s41, 0
    %s43 = scalar_select %p42, %s41, 0
    %s44 = smul.addr %s43, 8
    %s45 = scalar_lea.vmem %s1, %s44
    %s46 = sadd.s32 0, 0
    %p47 = scmp.lt.s32.totalorder %s46, 0
    %s48 = scalar_select %p47, %s46, 0
    %p49 = scmp.lt.s32.totalorder %s48, 0
    %s50 = scalar_select %p49, %s48, 0
    %s51 = smul.addr %s50, 8
    %s52 = scalar_lea.vmem %s0, %s51
    %s53 = sadd.s32 0, 0
    %p54 = scmp.lt.s32.totalorder %s53, 0
    %s55 = scalar_select %p54, %s53, 0
    %s56 = sadd.s32 0, 0
    %p57 = scmp.lt.s32.totalorder %s56, 0
    %s58 = scalar_select %p57, %s56, 0
    %p59 = scmp.lt.s32.totalorder %s58, 0
    %s60 = scalar_select %p59, %s58, 0
    %s61 = smul.addr %s60, 8
    %s62 = scalar_lea.vmem %s1, %s61
    %s63 = sadd.s32 0, 0
    %p64 = scmp.lt.s32.totalorder %s63, 0
    %s65 = scalar_select %p64, %s63, 0
    %p66 = scmp.eq.s32.totalorder 0, 0
    // Predicated region
    $region10: #{tpu_custom_call.1} parent=1 // pred_check
      %p67 = pneg %p66
    $region11: #{tpu_custom_call.1} parent=1 // pred_check_branch
      %69 = sbr.rel (%p67) target = $region13
    $region12: #{tpu_custom_call.1} parent=1 // pred_region
      %70 = vst [vmem:[#allocation2] sm:$0xff] 0.0
    $region13: #{tpu_custom_call.1} parent=1 // pred_fallthru
      _
    %v71 = vld [vmem:[%s52] sm:$0xff]
    %v72 = vld [vmem:[%s62] sm:$0xff]
    %s73 = sadd.s32 0, 0
    %s74 = smul.u32 %s73, 8
    %v75 = vlaneseq
    %v76 = vand.u32 %v75, 127
    %v77 = vlaneseq
    %v78 = vshrl.u32 %v77, 7
    %v79 = vstv %s74
    %v80 = vadd.s32 %v78, %v79
    %p81 = scmp.lt.s32.totalorder %s73, 1
    %82 = vset.pattern.permute.xlu0 0
    %83 = vperm.xlu0 %82, %v72
    %v84 = vpop.permute.xlu0 %83
    %vm85 = vcmp.eq.s32.totalorder %v76, %v84
    %vm86 = vcmp.lt.s32.totalorder %v80, 8
    %vm87 = vmand %vm85, %vm86
    %s88 = scalar_select %p81, 1, 0
    %v89 = vstv %s88
    %vm90 = vcmp.eq.s32.totalorder %v89, 1
    %vm91 = vmand %vm87, %vm90
    %v92 = vsel %vm91, %v71, 0.0
    %vm93 = vcmask 130048
    %v94 = vsel %vm93, %v92, 0.0
    %95 = vadd.xlane.f32.xlu0 %v94
    %v96 = vpop.xlane.xlu0 %95
    %v97 = vrot.slane %v96, 4
    %v98 = vadd.f32 %v96, %v97
    %v99 = vrot.slane %v98, 2
    %v100 = vadd.f32 %v98, %v99
    %v101 = vrot.slane %v100, 1
    %v102 = vadd.f32 %v100, %v101
    %s103 = vtos %v102
    %v104 = vld [vmem:[#allocation2] sm:$0xff]
    %v105 = vstv %s103
    %v106 = vadd.f32 %v104, %v105
    %107 = vst [vmem:[#allocation2] sm:$0xff] %v106
    // Predicated region
    $region14: #{tpu_custom_call.1} parent=1 // pred_check
      _
    $region15: #{tpu_custom_call.1} parent=1 // pred_check_branch
      %109 = sbr.rel (0) target = $region17
    $region16: #{tpu_custom_call.1} parent=1 // pred_region
      %s111 = ssub.s32 128, 128
      %112 = vsyncadd [#allocation3], %s111
      %s114 = sshll.u32 [#allocation2], 4
      %s115 = int_to_ptr.vmem [resolvable:$true] %s114
      %117 = dma.vmem_to_hbm [thread:$0]  %s115, 128, %s2, [#allocation3]
    $region17: #{tpu_custom_call.1} parent=1 // pred_fallthru
      _
    // Predicated region
    $region18: #{tpu_custom_call.1} parent=1 // pred_check
      _
    $region19: #{tpu_custom_call.1} parent=1 // pred_check_branch
      %119 = sbr.rel (0) target = $region21
    $region20: #{tpu_custom_call.1} parent=1 // pred_region
      %120 = dma.done [#allocation3], 128
    $region21: #{tpu_custom_call.1} parent=1 // pred_fallthru
      _
    %121 = vsyncpa [#allocation3], 1

</llo_original>
